<compile_context>
chip_gen: v7x
topology: tpu7x:2x2x1
jax: 0.10.0
libtpu: 0.0.40
codegen_flags: <defaults>
</compile_context>

<pallas_src>
import jax
import jax.numpy as jnp
from jax.experimental import pallas as pl
from jax.experimental.pallas import tpu as pltpu

_LANES = 128
_SOFTPLUS_THRESHOLD = 20.0


def _mish_kernel(x_ref, o_ref):
    x = x_ref[...].astype(jnp.float32)
    # Rational form of tanh(softplus(x)); clamp exp arg so t^2 stays finite.
    t = jnp.exp(jnp.minimum(x, _SOFTPLUS_THRESHOLD))
    u = t * (t + 2.0)                      # e^{2x} + 2 e^{x}
    d = u + 2.0
    r = pl.reciprocal(d, approx=True)      # EUP approx reciprocal (free slot)
    r = r * (2.0 - d * r)                  # one Newton step (VALU) -> ~f32 exact
    tanh_sp = u * r
    # PyTorch threshold branch: for x > 20, softplus(x) = x and tanh(x) == 1 in f32.
    tanh_sp = jnp.where(x > _SOFTPLUS_THRESHOLD, 1.0, tanh_sp)
    o_ref[...] = (x * tanh_sp).astype(o_ref.dtype)


def _mish_ref(x):
    """Pure-jnp reference; also used for the <128-element ragged tail."""
    xf = x.astype(jnp.float32)
    sp = jnp.where(xf > _SOFTPLUS_THRESHOLD, xf,
                   jnp.log1p(jnp.exp(jnp.minimum(xf, _SOFTPLUS_THRESHOLD))))
    return (xf * jnp.tanh(sp)).astype(x.dtype)


def _vmem_capacity_bytes():
    try:
        return int(pltpu.get_tpu_info().vmem_capacity_bytes)
    except Exception:
        return 64 << 20   # conservative fallback: v7x per-TC VMEM


def _sublane_multiple(dtype):
    itemsize = jnp.dtype(dtype).itemsize
    if itemsize >= 4:
        return 8          # f32
    if itemsize == 2:
        return 16         # bf16 packs 2 rows / sublane
    return 32             # int8 / fp8


def _choose_block_rows(rows, lanes, dtype, block_elems):
    itemsize = jnp.dtype(dtype).itemsize
    sub = _sublane_multiple(dtype)
    br = max(1, block_elems // lanes)
    # VMEM clamp: in + out, each double-buffered -> 4 block copies (+ headroom)
    # must fit the generation's VMEM (64 MiB/TC on v7x, 128 MiB on v5e/v6e).
    vmem_cap = _vmem_capacity_bytes()
    budget = max(4 << 20, vmem_cap // 2 - (2 << 20))
    br = min(br, max(sub, budget // (4 * lanes * itemsize)))
    # Megacore: keep >= ~8 grid steps once there is enough data (>= 8 MiB) to
    # amortize the ~0.35 us per-step overhead, so both v7x TCs split the work.
    if rows * lanes * itemsize >= (8 << 20):
        br = min(br, (rows + 7) // 8)
    if br >= rows:
        return rows                         # full-extent block (always legal)
    return max(sub, (br // sub) * sub)      # dtype-aware (8/16/32, 128) tiling


def _mish_2d(x2d, block_rows):
    rows, lanes = x2d.shape
    dtype = x2d.dtype
    itemsize = jnp.dtype(dtype).itemsize
    n = rows * lanes
    vmem_needed = 4 * block_rows * lanes * itemsize + (2 << 20)
    vmem_limit = int(min(max(vmem_needed, 32 << 20), _vmem_capacity_bytes()))
    return pl.pallas_call(
        _mish_kernel,
        out_shape=jax.ShapeDtypeStruct((rows, lanes), dtype),
        grid_spec=pltpu.PrefetchScalarGridSpec(
            num_scalar_prefetch=0,
            grid=(pl.cdiv(rows, block_rows),),
            in_specs=[pl.BlockSpec((block_rows, lanes), lambda i: (i, 0))],
            out_specs=pl.BlockSpec((block_rows, lanes), lambda i: (i, 0)),
        ),
        compiler_params=pltpu.CompilerParams(
            dimension_semantics=("parallel",),
            vmem_limit_bytes=vmem_limit),
        cost_estimate=pl.CostEstimate(
            flops=10 * n,
            transcendentals=2 * n,
            bytes_accessed=2 * n * itemsize),
    )(x2d)


def mish(x, *, block_elems=1024 * 1024):
    """Elementwise Mish, any shape. block_elems ~ elements per block (4 MiB f32)."""
    orig_shape = x.shape
    total = int(x.size)
    if total == 0:
        return x

    flat = x.reshape(-1)
    main = (total // _LANES) * _LANES
    tail = total - main

    if main == 0:
        # Whole array smaller than one 128-lane row: pad to a single (1, 128)
        # full-extent block (a few hundred bytes, so padding cost is noise).
        padded = jnp.pad(flat, (0, _LANES - total))
        out = _mish_2d(padded.reshape(1, _LANES), block_rows=1)
        return out.reshape(-1)[:total].reshape(orig_shape)

    # Lane-dense slab; widen lanes when divisibility allows (bigger bursts).
    lanes = _LANES
    for cand in (1024, 512, 256):
        if main % cand == 0:
            lanes = cand
            break
    rows = main // lanes

    main_flat = flat if tail == 0 else flat[:main]
    block_rows = _choose_block_rows(rows, lanes, x.dtype, block_elems)
    out_main = _mish_2d(main_flat.reshape(rows, lanes), block_rows)

    if tail == 0:
        return out_main.reshape(orig_shape)
    # Ragged tail (< 128 elems): tiny jnp epilogue, no full padded copy/slice.
    out_tail = _mish_ref(flat[main:])
    return jnp.concatenate([out_main.reshape(-1), out_tail]).reshape(orig_shape)


if __name__ == "__main__":
    key = jax.random.PRNGKey(0)

    # Small activation-style input consistent with the module's usage.
    x = jax.random.normal(key, (2, 4, 16, 16), dtype=jnp.float32) * 5.0
    y = mish(x)
    jax.block_until_ready(y)
    assert y.shape == x.shape and y.dtype == x.dtype
    assert jnp.allclose(y, _mish_ref(x), atol=1e-3, rtol=1e-3)

    # Ragged path: whole array smaller than one 128-lane row.
    x2 = jax.random.normal(jax.random.PRNGKey(1), (3, 5, 7), dtype=jnp.float32) * 5.0
    y2 = mish(x2)
    jax.block_until_ready(y2)
    assert y2.shape == x2.shape and y2.dtype == x2.dtype
    assert jnp.allclose(y2, _mish_ref(x2), atol=1e-3, rtol=1e-3)

    # Ragged path: full 128-lane rows plus a <128-element tail.
    x3 = jax.random.normal(jax.random.PRNGKey(2), (5, 130), dtype=jnp.float32) * 5.0
    y3 = mish(x3)
    jax.block_until_ready(y3)
    assert y3.shape == x3.shape and y3.dtype == x3.dtype
    assert jnp.allclose(y3, _mish_ref(x3), atol=1e-3, rtol=1e-3)

    print("KERNEL_OK")
</pallas_src>

<mosaic_0001>
module attributes {stable_mosaic.version = 11 : i64} {
  func.func @_mish_kernel(%arg0: i32, %arg1: memref<2x1024xf32, #tpu.memory_space<vmem>>, %arg2: memref<2x1024xf32, #tpu.memory_space<vmem>>) attributes {dimension_semantics = [#tpu.dimension_semantics<parallel>], iteration_bounds = array<i64: 1>, scalar_prefetch = 0 : i64, scratch_operands = 0 : i64, tpu.core_type = #tpu.core_type<tc>, window_params = [{transform_indices = @transform_0, window_bounds = array<i64: 2, 1024>}, {transform_indices = @transform_1, window_bounds = array<i64: 2, 1024>}]} {
    %c0 = arith.constant 0 : index
    %c0_0 = arith.constant 0 : index
    %0 = vector.load %arg1[%c0, %c0_0] : memref<2x1024xf32, #tpu.memory_space<vmem>>, vector<2x1024xf32>
    %cst = arith.constant 2.000000e+01 : f32
    %1 = vector.broadcast %cst : f32 to vector<2x1024xf32>
    %2 = arith.minimumf %0, %1 : vector<2x1024xf32>
    %3 = math.exp %2 : vector<2x1024xf32>
    %cst_1 = arith.constant 2.000000e+00 : f32
    %4 = vector.broadcast %cst_1 : f32 to vector<2x1024xf32>
    %5 = arith.addf %3, %4 : vector<2x1024xf32>
    %6 = arith.mulf %3, %5 : vector<2x1024xf32>
    %cst_2 = arith.constant 2.000000e+00 : f32
    %7 = vector.broadcast %cst_2 : f32 to vector<2x1024xf32>
    %8 = arith.addf %6, %7 : vector<2x1024xf32>
    %9 = tpu.reciprocal %8 {approx = true} : vector<2x1024xf32> -> vector<2x1024xf32>
    %10 = arith.mulf %8, %9 : vector<2x1024xf32>
    %cst_3 = arith.constant 2.000000e+00 : f32
    %11 = vector.broadcast %cst_3 : f32 to vector<2x1024xf32>
    %12 = arith.subf %11, %10 : vector<2x1024xf32>
    %13 = arith.mulf %9, %12 : vector<2x1024xf32>
    %14 = arith.mulf %6, %13 : vector<2x1024xf32>
    %cst_4 = arith.constant 2.000000e+01 : f32
    %15 = vector.broadcast %cst_4 : f32 to vector<2x1024xf32>
    %16 = arith.cmpf ogt, %0, %15 : vector<2x1024xf32>
    %cst_5 = arith.constant 1.000000e+00 : f32
    %17 = vector.broadcast %cst_5 : f32 to vector<2x1024xf32>
    %18 = arith.select %16, %17, %14 : vector<2x1024xi1>, vector<2x1024xf32>
    %19 = arith.mulf %0, %18 : vector<2x1024xf32>
    %c0_6 = arith.constant 0 : index
    %c0_7 = arith.constant 0 : index
    %20 = vector.load %arg2[%c0_6, %c0_7] : memref<2x1024xf32, #tpu.memory_space<vmem>>, vector<2x1024xf32>
    tpu.vector_store %arg2[%c0_6, %c0_7], %19 {strides = array<i32>} : memref<2x1024xf32, #tpu.memory_space<vmem>>, vector<2x1024xf32>,
    return
  }
  func.func @transform_0(%arg0: i32) -> (i32, i32) {
    %c0_i32 = arith.constant 0 : i32
    %c0_i32_0 = arith.constant 0 : i32
    return %arg0, %c0_i32 : i32, i32
  }
  func.func @transform_1(%arg0: i32) -> (i32, i32) {
    %c0_i32 = arith.constant 0 : i32
    %c0_i32_0 = arith.constant 0 : i32
    return %arg0, %c0_i32 : i32, i32
  }
}

</mosaic_0001>

<llo_original>
// kernel: tpu_custom_call.1
$region0: #{tpu_custom_call.1}
  #allocation0 [shape = 'u32[]', space=smem, size = 0x4, offset = 0x4, fixed_abs, tag = 'smem constant byte address 0x4 - core index']
  #allocation1 [shape = 'u32[144,128]{1,0:T(1,128)}', space=vmem, size = 0x12000, scoped, tag = 'internal scratch']
  %s0 = inlined_call_operand.hbm [shape: f32[2,1024], index: 0, kind: input, shape index: {}]
  %s1 = inlined_call_operand.hbm [shape: f32[2,1024], index: 1, kind: output, shape index: {}]
  %s2 = sld [smem:[#allocation0]]
  $region18: #{tpu_custom_call.1} parent=0
    _
  %s4 = ssub.s32 1, %s2
  %s5 = scalar_select 0, %s4, %s2
  $region1: #{tpu_custom_call.1} parent=0
    #allocation2 [shape = 'u8[8192]{0}', space=vmem, size = 0x2000, scoped, tag = 'input window, operand 0, single buffered']
    #allocation3 [shape = 's32[1]{0}', space=sflag, size = 0x4, scoped, tag = 'scoped memory for tpu_custom_call.1']
    #allocation4 [shape = 's32[1]{0}', space=sflag, size = 0x4, scoped, tag = 'scoped memory for tpu_custom_call.1']
    #allocation5 [shape = 'u8[8192]{0}', space=vmem, size = 0x2000, scoped, tag = 'output window, operand 0, single buffered']
    %6 = vsyncpa [#allocation3], 0
    %7 = vsyncpa [#allocation4], 0
    // Predicated region
    $region2: #{tpu_custom_call.1} parent=1 // pred_check
      _
    $region3: #{tpu_custom_call.1} parent=1 // pred_check_branch
      %9 = sbr.rel (0) target = $region5
    $region4: #{tpu_custom_call.1} parent=1 // pred_region
      %s11 = ssub.s32 256, 256
      %12 = vsyncadd [#allocation3], %s11
      %s14 = sshll.u32 [#allocation2], 4
      %s15 = int_to_ptr.vmem [resolvable:$true] %s14
      %17 = dma.hbm_to_vmem [thread:$0]  %s0, 256, %s15, [#allocation3]
    $region5: #{tpu_custom_call.1} parent=1 // pred_fallthru
      _
    // Predicated region
    $region6: #{tpu_custom_call.1} parent=1 // pred_check
      _
    $region7: #{tpu_custom_call.1} parent=1 // pred_check_branch
      %19 = sbr.rel (0) target = $region9
    $region8: #{tpu_custom_call.1} parent=1 // pred_region
      %20 = dma.done [#allocation3], 256
    $region9: #{tpu_custom_call.1} parent=1 // pred_fallthru
      _
    %v21 = vld [vmem:[#allocation2] sm:$0xff]
    %v22 = vld [vmem:[#allocation2 + $0x8] sm:$0xff]
    %v23 = vmin.f32 %v21, 20.0
    %v24 = vmin.f32 %v22, 20.0
    %v25 = vmul.f32 %v23, 1.442695
    %v26 = vpow.pop %v25
    %v27 = vmul.f32 %v24, 1.442695
    %v28 = vpow.pop %v27
    %v29 = vadd.f32 %v26, 2.0
    %v30 = vadd.f32 %v28, 2.0
    %v31 = vmul.f32 %v26, %v29
    %v32 = vmul.f32 %v28, %v30
    %v33 = vadd.f32 %v31, 2.0
    %v34 = vadd.f32 %v32, 2.0
    %v35 = vrcp.pop %v33
    %v36 = vrcp.pop %v34
    %v37 = vmul.f32 %v33, %v35
    %v38 = vmul.f32 %v34, %v36
    %v39 = vsub.f32 2.0, %v37
    %v40 = vsub.f32 2.0, %v38
    %v41 = vmul.f32 %v35, %v39
    %v42 = vmul.f32 %v36, %v40
    %v43 = vmul.f32 %v31, %v41
    %v44 = vmul.f32 %v32, %v42
    %vm45 = vcmp.gt.f32.partialorder %v21, 20.0
    %vm46 = vcmp.gt.f32.partialorder %v22, 20.0
    %v47 = vsel %vm45, 1.0, %v43
    %v48 = vsel %vm46, 1.0, %v44
    %v49 = vmul.f32 %v21, %v47
    %v50 = vmul.f32 %v22, %v48
    %51 = vst [vmem:[#allocation5] sm:$0xff] %v49
    %52 = vst [vmem:[#allocation5 + $0x8] sm:$0xff] %v50
    // Predicated region
    $region10: #{tpu_custom_call.1} parent=1 // pred_check
      _
    $region11: #{tpu_custom_call.1} parent=1 // pred_check_branch
      %54 = sbr.rel (0) target = $region13
    $region12: #{tpu_custom_call.1} parent=1 // pred_region
      %s56 = ssub.s32 256, 256
      %57 = vsyncadd [#allocation4], %s56
      %s59 = sshll.u32 [#allocation5], 4
      %s60 = int_to_ptr.vmem [resolvable:$true] %s59
      %62 = dma.vmem_to_hbm [thread:$0]  %s60, 256, %s1, [#allocation4]
    $region13: #{tpu_custom_call.1} parent=1 // pred_fallthru
      _
    // Predicated region
    $region14: #{tpu_custom_call.1} parent=1 // pred_check
      _
    $region15: #{tpu_custom_call.1} parent=1 // pred_check_branch
      %64 = sbr.rel (0) target = $region17
    $region16: #{tpu_custom_call.1} parent=1 // pred_region
      %65 = dma.done [#allocation4], 256
    $region17: #{tpu_custom_call.1} parent=1 // pred_fallthru
      _
    %66 = vsyncpa [#allocation3], 1
    %67 = vsyncpa [#allocation4], 1

</llo_original>
